<compile_context>
chip_gen: v6e
topology: v6e:2x2x1
jax: 0.10.0
libtpu: 0.0.40
codegen_flags: <defaults>
</compile_context>

<pallas_src>
import jax
import jax.numpy as jnp
from jax.experimental import pallas as pl
from jax.experimental.pallas import tpu as pltpu


def _round_up(x, m):
    return (x + m - 1) // m * m


# ----------------------------- Pallas kernel ------------------------------ #
def _matmul_bias_relu_kernel(p_ref, w_ref, b_ref, o_ref):
    # p_ref: (TM, Kp) bf16 patches, w_ref: (Kp, Cp) bf16 (BN scale folded in),
    # b_ref: (1, Cp) f32 folded BN bias, o_ref: (TM, Cp) bf16 output tile.
    acc = jnp.dot(p_ref[...], w_ref[...], preferred_element_type=jnp.float32)
    y = jnp.maximum(acc + b_ref[...], 0.0)          # f32 epilogue (v5e safe)
    o_ref[...] = y.astype(o_ref.dtype)


def conv3x3_bn_relu(x_nhwc, w_oihw, gamma, beta, mean, var, *, stride,
                    eps=1e-5, tile_m=1024, compute_dtype=jnp.bfloat16,
                    out_dtype=jnp.bfloat16):
    """3x3 conv (pad=1, no bias) + BatchNorm(eval) + ReLU on NHWC activations."""
    N, H, W, Cin = x_nhwc.shape
    Cout = w_oihw.shape[0]
    Ho = (H + 2 - 3) // stride + 1
    Wo = (W + 2 - 3) // stride + 1

    K = 9 * Cin
    Kp = _round_up(max(K, 128), 128)      # lane-dense contraction dim
    Cp = _round_up(max(Cout, 128), 128)   # lane-dense output channels

    # --- glue: zero-pad and extract im2col patches (bf16) ---
    x_c = x_nhwc.astype(compute_dtype)
    xp = jnp.pad(x_c, ((0, 0), (1, 1), (1, 1), (0, 0)))
    patches = []
    for kh in range(3):
        for kw in range(3):
            patches.append(
                xp[:, kh:kh + (Ho - 1) * stride + 1:stride,
                      kw:kw + (Wo - 1) * stride + 1:stride, :])
    if Kp > K:
        patches.append(jnp.zeros((N, Ho, Wo, Kp - K), compute_dtype))
    pmat = jnp.concatenate(patches, axis=-1).reshape(N * Ho * Wo, Kp)

    M = N * Ho * Wo
    TM = min(tile_m, _round_up(M, 8))     # M tile: multiple of 8 sublanes
    Mp = _round_up(M, TM)
    if Mp > M:
        pmat = jnp.pad(pmat, ((0, Mp - M), (0, 0)))

    # --- fold BatchNorm (eval) into per-channel scale/bias; scale -> weights ---
    inv_std = jax.lax.rsqrt(var + eps)
    scale = gamma * inv_std                        # (Cout,)
    bias = beta - mean * scale                     # (Cout,)
    # (Cout, Cin, KH, KW) -> (KH, KW, Cin, Cout) -> (9*Cin, Cout); matches the
    # (kh, kw, cin) ordering of the patches above.
    wmat = jnp.transpose(w_oihw, (2, 3, 1, 0)).reshape(K, Cout) * scale[None, :]
    wmat = jnp.pad(wmat, ((0, Kp - K), (0, Cp - Cout))).astype(compute_dtype)
    bvec = jnp.pad(bias, (0, Cp - Cout)).reshape(1, Cp).astype(jnp.float32)

    grid = (Mp // TM,)
    out = pl.pallas_call(
        _matmul_bias_relu_kernel,
        out_shape=jax.ShapeDtypeStruct((Mp, Cp), out_dtype),
        grid=grid,
        in_specs=[
            pl.BlockSpec((TM, Kp), lambda i: (i, 0)),   # patch row tile
            pl.BlockSpec((Kp, Cp), lambda i: (0, 0)),   # weights (resident)
            pl.BlockSpec((1, Cp), lambda i: (0, 0)),    # folded BN bias
        ],
        out_specs=pl.BlockSpec((TM, Cp), lambda i: (i, 0)),
        compiler_params=pltpu.CompilerParams(
            dimension_semantics=("parallel",)),
    )(pmat, wmat, bvec)
    return out[:M, :Cout].reshape(N, Ho, Wo, Cout)


# --------------------------- parameter creation ---------------------------- #
def _kaiming_normal(key, cout, cin, kh, kw):
    fan_in = cin * kh * kw
    std = (2.0 / fan_in) ** 0.5
    return std * jax.random.normal(key, (cout, cin, kh, kw), jnp.float32)


def make_detail_branch_params(key, inchannel, out_channel=128):
    inter = out_channel // 2
    # (cin, cout, stride) for the 6 convs of block1..block3
    cfg = [
        (inchannel, inter, 2), (inter, inter, 1),                 # block1
        (inter, inter, 2), (inter, inter, 1),                     # block2
        (inter, out_channel, 2), (out_channel, out_channel, 1),   # block3
    ]
    params = []
    keys = jax.random.split(key, len(cfg))
    for k, (cin, cout, stride) in zip(keys, cfg):
        params.append(dict(
            w=_kaiming_normal(k, cout, cin, 3, 3),
            gamma=jnp.ones((cout,), jnp.float32),
            beta=jnp.zeros((cout,), jnp.float32),
            mean=jnp.zeros((cout,), jnp.float32),   # BN running_mean (eval)
            var=jnp.ones((cout,), jnp.float32),     # BN running_var  (eval)
            stride=stride,
        ))
    return params


def detail_branch_forward(x_nhwc, params):
    y = x_nhwc
    for p in params:
        y = conv3x3_bn_relu(y, p["w"], p["gamma"], p["beta"], p["mean"],
                            p["var"], stride=p["stride"])
    return y


# ------------------------------ pure-JAX refs ------------------------------ #
def _reference_forward_nchw(x_nchw, params, eps=1e-5, match_kernel_precision=True):
    """XLA reference. match_kernel_precision=True mirrors the kernel's bf16
    operand / f32-accumulate / bf16-activation scheme; False is pure f32."""
    y = x_nchw
    for p in params:
        inv_std = jax.lax.rsqrt(p["var"] + eps)
        scale = p["gamma"] * inv_std
        bias = p["beta"] - p["mean"] * scale
        if match_kernel_precision:
            w = (p["w"] * scale[:, None, None, None]).astype(jnp.bfloat16)
            out = jax.lax.conv_general_dilated(
                y.astype(jnp.bfloat16), w,
                window_strides=(p["stride"], p["stride"]),
                padding=((1, 1), (1, 1)),
                dimension_numbers=("NCHW", "OIHW", "NCHW"),
                preferred_element_type=jnp.float32)
            out = out + bias[None, :, None, None]
            y = jnp.maximum(out, 0.0).astype(jnp.bfloat16)
        else:
            out = jax.lax.conv_general_dilated(
                y, p["w"], window_strides=(p["stride"], p["stride"]),
                padding=((1, 1), (1, 1)),
                dimension_numbers=("NCHW", "OIHW", "NCHW"))
            y = jnp.maximum(out * scale[None, :, None, None]
                            + bias[None, :, None, None], 0.0)
    return y.astype(jnp.float32)


# ---------------------------------- main ----------------------------------- #
if __name__ == "__main__":
    key = jax.random.PRNGKey(0)
    k_x, k_p = jax.random.split(key)

    # Small shapes consistent with the module: NCHW input, out_channel=16.
    N, Cin, H, W = 2, 4, 16, 16
    out_channel = 16

    x_nchw = jax.random.normal(k_x, (N, Cin, H, W), jnp.float32)
    params = make_detail_branch_params(k_p, Cin, out_channel)

    # Pallas path (NHWC inside, bf16 activations between layers).
    x_nhwc = jnp.transpose(x_nchw, (0, 2, 3, 1))
    y_nhwc = detail_branch_forward(x_nhwc, params)
    y_nhwc = jax.block_until_ready(y_nhwc)
    y_nchw = jnp.transpose(y_nhwc, (0, 3, 1, 2)).astype(jnp.float32)

    assert y_nchw.shape == (N, out_channel, H // 8, W // 8), y_nchw.shape

    # Tight check against a precision-matched XLA reference (same bf16
    # operands / f32 accumulation / folded BN).
    y_ref_bf16 = _reference_forward_nchw(x_nchw, params,
                                         match_kernel_precision=True)
    err_matched = float(jnp.max(jnp.abs(y_nchw - y_ref_bf16)))
    assert jnp.allclose(y_nchw, y_ref_bf16, atol=3e-2, rtol=3e-2), err_matched

    # Loose sanity check against the pure-f32 original-module semantics.
    y_ref_f32 = _reference_forward_nchw(x_nchw, params,
                                        match_kernel_precision=False)
    err_f32 = float(jnp.max(jnp.abs(y_nchw - y_ref_f32)))
    assert jnp.allclose(y_nchw, y_ref_f32, atol=1e-1, rtol=1e-1), err_f32

    print("KERNEL_OK")
</pallas_src>

<mosaic_0001>
module attributes {stable_mosaic.version = 11 : i64} {
  func.func @_matmul_bias_relu_kernel(%arg0: i32, %arg1: memref<128x128xbf16, #tpu.memory_space<vmem>>, %arg2: memref<128x128xbf16, #tpu.memory_space<vmem>>, %arg3: memref<1x128xf32, #tpu.memory_space<vmem>>, %arg4: memref<128x128xbf16, #tpu.memory_space<vmem>>) attributes {dimension_semantics = [#tpu.dimension_semantics<parallel>], iteration_bounds = array<i64: 1>, scalar_prefetch = 0 : i64, scratch_operands = 0 : i64, tpu.core_type = #tpu.core_type<tc>, window_params = [{transform_indices = @transform_0, window_bounds = array<i64: 128, 128>}, {pipeline_mode = #tpu.pipeline_mode<synchronous>, transform_indices = @transform_1, window_bounds = array<i64: 128, 128>}, {pipeline_mode = #tpu.pipeline_mode<synchronous>, transform_indices = @transform_2, window_bounds = array<i64: 1, 128>}, {transform_indices = @transform_3, window_bounds = array<i64: 128, 128>}]} {
    %c0 = arith.constant 0 : index
    %c0_0 = arith.constant 0 : index
    %0 = vector.load %arg1[%c0, %c0_0] : memref<128x128xbf16, #tpu.memory_space<vmem>>, vector<128x128xbf16>
    %c0_1 = arith.constant 0 : index
    %c0_2 = arith.constant 0 : index
    %1 = vector.load %arg2[%c0_1, %c0_2] : memref<128x128xbf16, #tpu.memory_space<vmem>>, vector<128x128xbf16>
    %cst = arith.constant dense<0.000000e+00> : vector<128x128xf32>
    %2 = tpu.matmul %0, %1, %cst {dimension_numbers = #tpu.dot_dimension_numbers<[1], [0], [0], [1], [0, 0, 1, 1], [], []>} : vector<128x128xbf16>, vector<128x128xbf16>, vector<128x128xf32> -> vector<128x128xf32>
    %c0_3 = arith.constant 0 : index
    %c0_4 = arith.constant 0 : index
    %3 = vector.load %arg3[%c0_3, %c0_4] : memref<1x128xf32, #tpu.memory_space<vmem>>, vector<1x128xf32>
    %4 = vector.broadcast %3 : vector<1x128xf32> to vector<128x128xf32>
    %5 = arith.addf %2, %4 : vector<128x128xf32>
    %cst_5 = arith.constant 0.000000e+00 : f32
    %6 = vector.broadcast %cst_5 : f32 to vector<128x128xf32>
    %7 = arith.maximumf %5, %6 : vector<128x128xf32>
    %8 = arith.truncf %7 : vector<128x128xf32> to vector<128x128xbf16>
    %c0_6 = arith.constant 0 : index
    %c0_7 = arith.constant 0 : index
    %9 = vector.load %arg4[%c0_6, %c0_7] : memref<128x128xbf16, #tpu.memory_space<vmem>>, vector<128x128xbf16>
    tpu.vector_store %arg4[%c0_6, %c0_7], %8 {strides = array<i32>} : memref<128x128xbf16, #tpu.memory_space<vmem>>, vector<128x128xbf16>,
    return
  }
  func.func @transform_0(%arg0: i32) -> (i32, i32) {
    %c0_i32 = arith.constant 0 : i32
    %c0_i32_0 = arith.constant 0 : i32
    return %arg0, %c0_i32 : i32, i32
  }
  func.func @transform_1(%arg0: i32) -> (i32, i32) {
    %c0_i32 = arith.constant 0 : i32
    %c0_i32_0 = arith.constant 0 : i32
    %c0_i32_1 = arith.constant 0 : i32
    return %c0_i32, %c0_i32_0 : i32, i32
  }
  func.func @transform_2(%arg0: i32) -> (i32, i32) {
    %c0_i32 = arith.constant 0 : i32
    %c0_i32_0 = arith.constant 0 : i32
    %c0_i32_1 = arith.constant 0 : i32
    return %c0_i32, %c0_i32_0 : i32, i32
  }
  func.func @transform_3(%arg0: i32) -> (i32, i32) {
    %c0_i32 = arith.constant 0 : i32
    %c0_i32_0 = arith.constant 0 : i32
    return %arg0, %c0_i32 : i32, i32
  }
}

</mosaic_0001>

<llo_original>
// kernel: tpu_custom_call.1
$region0: #{tpu_custom_call.1}
  #allocation0 [shape = 'u32[]', space=smem, size = 0x4, offset = 0x4, fixed_abs, tag = 'smem constant byte address 0x4 - core index']
  #allocation1 [shape = 'u32[144,128]{1,0:T(1,128)}', space=vmem, size = 0x12000, scoped, tag = 'internal scratch']
  %s0 = inlined_call_operand.hbm [shape: bf16[128,128], index: 0, kind: input, shape index: {}]
  %s1 = inlined_call_operand.hbm [shape: bf16[128,128], index: 1, kind: input, shape index: {}]
  %s2 = inlined_call_operand.vmem [shape: f32[1,128], index: 2, kind: input, shape index: {}]
  %s3 = inlined_call_operand.hbm [shape: bf16[128,128], index: 3, kind: output, shape index: {}]
  %s4 = sld [smem:[#allocation0]]
  $region30: #{tpu_custom_call.1} parent=0
    _
  %s6 = ssub.s32 1, %s4
  %s7 = scalar_select 0, %s6, %s4
  $region1: #{tpu_custom_call.1} parent=0
    #allocation2 [shape = 'u8[32768]{0}', space=vmem, size = 0x8000, scoped, tag = 'input window, operand 0, single buffered']
    #allocation3 [shape = 's32[1]{0}', space=sflag, size = 0x4, scoped, tag = 'scoped memory for tpu_custom_call.1']
    #allocation4 [shape = 's32[1]{0}', space=sflag, size = 0x4, scoped, tag = 'scoped memory for tpu_custom_call.1']
    #allocation5 [shape = 'u8[32768]{0}', space=vmem, size = 0x8000, scoped, tag = 'input window, operand 1, single buffered']
    #allocation6 [shape = 's32[1]{0}', space=sflag, size = 0x4, scoped, tag = 'scoped memory for tpu_custom_call.1']
    #allocation7 [shape = 'u8[32768]{0}', space=vmem, size = 0x8000, scoped, tag = 'output window, operand 0, single buffered']
    %8 = vsyncpa [#allocation3], 0
    %9 = vsyncpa [#allocation6], 0
    %10 = vsyncpa [#allocation4], 0
    // Predicated region
    $region2: #{tpu_custom_call.1} parent=1 // pred_check
      _
    $region3: #{tpu_custom_call.1} parent=1 // pred_check_branch
      %12 = sbr.rel (0) target = $region5
    $region4: #{tpu_custom_call.1} parent=1 // pred_region
      %s14 = ssub.s32 1024, 1024
      %15 = vsyncadd [#allocation3], %s14
      %s16 = sshll.u32 [#allocation2], 4
      %s17 = int_to_ptr.vmem [resolvable:$true] %s16
      %22 = dma.hbm_to_vmem [thread:$0]  %s0, 1024, %s17, [#allocation3], 64, 64, 4
    $region5: #{tpu_custom_call.1} parent=1 // pred_fallthru
      _
    // Predicated region
    $region6: #{tpu_custom_call.1} parent=1 // pred_check
      _
    $region7: #{tpu_custom_call.1} parent=1 // pred_check_branch
      %24 = sbr.rel (0) target = $region9
    $region8: #{tpu_custom_call.1} parent=1 // pred_region
      %s26 = ssub.s32 1024, 1024
      %27 = vsyncadd [#allocation6], %s26
      %s28 = sshll.u32 [#allocation5], 4
      %s29 = int_to_ptr.vmem [resolvable:$true] %s28
      %34 = dma.hbm_to_vmem [thread:$0]  %s1, 1024, %s29, [#allocation6], 64, 64, 4
    $region9: #{tpu_custom_call.1} parent=1 // pred_fallthru
      _
    // Predicated region
    $region10: #{tpu_custom_call.1} parent=1 // pred_check
      _
    $region11: #{tpu_custom_call.1} parent=1 // pred_check_branch
      %36 = sbr.rel (0) target = $region13
    $region12: #{tpu_custom_call.1} parent=1 // pred_region
      _
    $region13: #{tpu_custom_call.1} parent=1 // pred_fallthru
      _
    // Predicated region
    $region14: #{tpu_custom_call.1} parent=1 // pred_check
      _
    $region15: #{tpu_custom_call.1} parent=1 // pred_check_branch
      %38 = sbr.rel (0) target = $region17
    $region16: #{tpu_custom_call.1} parent=1 // pred_region
      %39 = dma.done [#allocation3], 1024
    $region17: #{tpu_custom_call.1} parent=1 // pred_fallthru
      _
    // Predicated region
    $region18: #{tpu_custom_call.1} parent=1 // pred_check
      _
    $region19: #{tpu_custom_call.1} parent=1 // pred_check_branch
      %41 = sbr.rel (0) target = $region21
    $region20: #{tpu_custom_call.1} parent=1 // pred_region
      %42 = dma.done [#allocation6], 1024
    $region21: #{tpu_custom_call.1} parent=1 // pred_fallthru
      _
    %v44 = vld [vmem:[#allocation2] sm:$0xf]
    %v45 = vld [vmem:[#allocation2 + $0x4] sm:$0xf]
    %v46 = vld [vmem:[#allocation2 + $0x8] sm:$0xf]
    %v47 = vld [vmem:[#allocation2 + $0xc] sm:$0xf]
    %v48 = vld [vmem:[#allocation2 + $0x10] sm:$0xf]
    %v49 = vld [vmem:[#allocation2 + $0x14] sm:$0xf]
    %v50 = vld [vmem:[#allocation2 + $0x18] sm:$0xf]
    %v51 = vld [vmem:[#allocation2 + $0x1c] sm:$0xf]
    %v52 = vld [vmem:[#allocation2 + $0x20] sm:$0xf]
    %v53 = vld [vmem:[#allocation2 + $0x24] sm:$0xf]
    %v54 = vld [vmem:[#allocation2 + $0x28] sm:$0xf]
    %v55 = vld [vmem:[#allocation2 + $0x2c] sm:$0xf]
    %v56 = vld [vmem:[#allocation2 + $0x30] sm:$0xf]
    %v57 = vld [vmem:[#allocation2 + $0x34] sm:$0xf]
    %v58 = vld [vmem:[#allocation2 + $0x38] sm:$0xf]
    %v59 = vld [vmem:[#allocation2 + $0x3c] sm:$0xf]
    %v60 = vld [vmem:[#allocation5] sm:$0xf]
    %v61 = vld [vmem:[#allocation5 + $0x4] sm:$0xf]
    %v62 = vld [vmem:[#allocation5 + $0x8] sm:$0xf]
    %v63 = vld [vmem:[#allocation5 + $0xc] sm:$0xf]
    %v64 = vld [vmem:[#allocation5 + $0x10] sm:$0xf]
    %v65 = vld [vmem:[#allocation5 + $0x14] sm:$0xf]
    %v66 = vld [vmem:[#allocation5 + $0x18] sm:$0xf]
    %v67 = vld [vmem:[#allocation5 + $0x1c] sm:$0xf]
    %v68 = vld [vmem:[#allocation5 + $0x20] sm:$0xf]
    %v69 = vld [vmem:[#allocation5 + $0x24] sm:$0xf]
    %v70 = vld [vmem:[#allocation5 + $0x28] sm:$0xf]
    %v71 = vld [vmem:[#allocation5 + $0x2c] sm:$0xf]
    %v72 = vld [vmem:[#allocation5 + $0x30] sm:$0xf]
    %v73 = vld [vmem:[#allocation5 + $0x34] sm:$0xf]
    %v74 = vld [vmem:[#allocation5 + $0x38] sm:$0xf]
    %v75 = vld [vmem:[#allocation5 + $0x3c] sm:$0xf]
    %v76 = vld [vmem:[%s2] sm:$0x1]
    %v78 = vlaneseq
    %v79 = vshrl.u32 %v78, 7
    %v80 = vsub.s32 0, %v79
    %v81 = vrot.slane %v76, %v80
    %v99 = vunpack.c.l.b16 %v44
    %v100 = vunpack.c.l.b16 %v45
    %v101 = vunpack.c.l.b16 %v46
    %v102 = vunpack.c.l.b16 %v47
    %v103 = vunpack.c.l.b16 %v48
    %v104 = vunpack.c.l.b16 %v49
    %v105 = vunpack.c.l.b16 %v50
    %v106 = vunpack.c.l.b16 %v51
    %v107 = vunpack.c.l.b16 %v52
    %v108 = vunpack.c.l.b16 %v53
    %v109 = vunpack.c.l.b16 %v54
    %v110 = vunpack.c.l.b16 %v55
    %v111 = vunpack.c.l.b16 %v56
    %v112 = vunpack.c.l.b16 %v57
    %v113 = vunpack.c.l.b16 %v58
    %v114 = vunpack.c.l.b16 %v59
    %v115 = vpack.c.b16 %v100, %v99
    %v116 = vpack.c.b16 %v102, %v101
    %v117 = vpack.c.b16 %v104, %v103
    %v118 = vpack.c.b16 %v106, %v105
    %v119 = vpack.c.b16 %v108, %v107
    %v120 = vpack.c.b16 %v110, %v109
    %v121 = vpack.c.b16 %v112, %v111
    %v122 = vpack.c.b16 %v114, %v113
    %v147 = vunpack.c.l.b16 %v60
    %v148 = vunpack.c.l.b16 %v61
    %v149 = vunpack.c.l.b16 %v62
    %v150 = vunpack.c.l.b16 %v63
    %v151 = vunpack.c.l.b16 %v64
    %v152 = vunpack.c.l.b16 %v65
    %v153 = vunpack.c.l.b16 %v66
    %v154 = vunpack.c.l.b16 %v67
    %v155 = vunpack.c.l.b16 %v68
    %v156 = vunpack.c.l.b16 %v69
    %v157 = vunpack.c.l.b16 %v70
    %v158 = vunpack.c.l.b16 %v71
    %v159 = vunpack.c.l.b16 %v72
    %v160 = vunpack.c.l.b16 %v73
    %v161 = vunpack.c.l.b16 %v74
    %v162 = vunpack.c.l.b16 %v75
    %v163 = vpack.c.b16 %v148, %v147
    %v164 = vpack.c.b16 %v150, %v149
    %v165 = vpack.c.b16 %v152, %v151
    %v166 = vpack.c.b16 %v154, %v153
    %v167 = vpack.c.b16 %v156, %v155
    %v168 = vpack.c.b16 %v158, %v157
    %v169 = vpack.c.b16 %v160, %v159
    %v170 = vpack.c.b16 %v162, %v161
    %179 = vmatprep.subr.bf16.mxu0 0
    %180 = vmatpush1.bf16.msra.mxu0 %v170
    %181 = vmatprep.subr.bf16.mxu0 0
    %182 = vmatpush1.bf16.msra.mxu0 %v169
    %183 = vmatprep.subr.bf16.mxu0 0
    %184 = vmatpush1.bf16.msra.mxu0 %v168
    %185 = vmatprep.subr.bf16.mxu0 0
    %186 = vmatpush1.bf16.msra.mxu0 %v167
    %187 = vmatprep.subr.bf16.mxu0 0
    %188 = vmatpush1.bf16.msra.mxu0 %v166
    %189 = vmatprep.subr.bf16.mxu0 0
    %190 = vmatpush1.bf16.msra.mxu0 %v165
    %191 = vmatprep.subr.bf16.mxu0 0
    %192 = vmatpush1.bf16.msra.mxu0 %v164
    %193 = vmatprep.subr.bf16.mxu0 0
    %194 = vmatpush1.bf16.msra.mxu0 %v163
    %195 = vmatprep.subr.bf16.mxu0 0
    %196 = vmatpush2.bf16.msra.mxu0 0
    %197 = vmatprep.subr.bf16.mxu0 0
    %198 = vmatpush2.bf16.msra.mxu0 0
    %199 = vmatprep.subr.bf16.mxu0 0
    %200 = vmatpush2.bf16.msra.mxu0 0
    %201 = vmatprep.subr.bf16.mxu0 0
    %202 = vmatpush2.bf16.msra.mxu0 0
    %203 = vmatprep.subr.bf16.mxu0 0
    %204 = vmatpush2.bf16.msra.mxu0 0
    %205 = vmatprep.subr.bf16.mxu0 0
    %206 = vmatpush2.bf16.msra.mxu0 0
    %207 = vmatprep.subr.bf16.mxu0 0
    %208 = vmatpush2.bf16.msra.mxu0 0
    %209 = vmatprep.subr.bf16.mxu0 0
    %210 = vmatpush2.bf16.msra.mxu0 0
    %211 = vmatprep.mubr.bf16.mxu0 0
    %212 = vmatmul.mubr.bf16.gmra.mxu0 %v115
    %v213 = vpop.f32.mrf.mxu0
    %v214 = vadd.f32 %v81, %v213
    %v215 = vpop.f32.mrf.mxu0
    %v216 = vpop.f32.mrf.mxu0
    %v217 = vadd.f32 %v81, %v216
    %v218 = vpop.f32.mrf.mxu0
    %219 = vmatprep.mubr.bf16.mxu0 0
    %220 = vmatmul.mubr.bf16.gmra.mxu0 %v116
    %v221 = vpop.f32.mrf.mxu0
    %v222 = vadd.f32 %v81, %v221
    %v223 = vpop.f32.mrf.mxu0
    %v224 = vpop.f32.mrf.mxu0
    %v225 = vadd.f32 %v81, %v224
    %v226 = vpop.f32.mrf.mxu0
    %227 = vmatprep.mubr.bf16.mxu0 0
    %228 = vmatmul.mubr.bf16.gmra.mxu0 %v117
    %v229 = vpop.f32.mrf.mxu0
    %v230 = vadd.f32 %v81, %v229
    %v231 = vpop.f32.mrf.mxu0
    %v232 = vpop.f32.mrf.mxu0
    %v233 = vadd.f32 %v81, %v232
    %v234 = vpop.f32.mrf.mxu0
    %235 = vmatprep.mubr.bf16.mxu0 0
    %236 = vmatmul.mubr.bf16.gmra.mxu0 %v118
    %v237 = vpop.f32.mrf.mxu0
    %v238 = vadd.f32 %v81, %v237
    %v239 = vpop.f32.mrf.mxu0
    %v240 = vpop.f32.mrf.mxu0
    %v241 = vadd.f32 %v81, %v240
    %v242 = vpop.f32.mrf.mxu0
    %243 = vmatprep.mubr.bf16.mxu0 0
    %244 = vmatmul.mubr.bf16.gmra.mxu0 %v119
    %v245 = vpop.f32.mrf.mxu0
    %v246 = vadd.f32 %v81, %v245
    %v247 = vpop.f32.mrf.mxu0
    %v248 = vpop.f32.mrf.mxu0
    %v249 = vadd.f32 %v81, %v248
    %v250 = vpop.f32.mrf.mxu0
    %251 = vmatprep.mubr.bf16.mxu0 0
    %252 = vmatmul.mubr.bf16.gmra.mxu0 %v120
    %v253 = vpop.f32.mrf.mxu0
    %v254 = vadd.f32 %v81, %v253
    %v255 = vpop.f32.mrf.mxu0
    %v256 = vpop.f32.mrf.mxu0
    %v257 = vadd.f32 %v81, %v256
    %v258 = vpop.f32.mrf.mxu0
    %259 = vmatprep.mubr.bf16.mxu0 0
    %260 = vmatmul.mubr.bf16.gmra.mxu0 %v121
    %v261 = vpop.f32.mrf.mxu0
    %v262 = vadd.f32 %v81, %v261
    %v263 = vpop.f32.mrf.mxu0
    %v264 = vpop.f32.mrf.mxu0
    %v265 = vadd.f32 %v81, %v264
    %v266 = vpop.f32.mrf.mxu0
    %267 = vmatprep.mubr.bf16.mxu0 0
    %268 = vmatmul.mubr.bf16.gmra.mxu0 %v122
    %v269 = vpop.f32.mrf.mxu0
    %v270 = vadd.f32 %v81, %v269
    %v271 = vpop.f32.mrf.mxu0
    %v272 = vpop.f32.mrf.mxu0
    %v273 = vadd.f32 %v81, %v272
    %v274 = vpop.f32.mrf.mxu0
    %275 = vdwg.mxu0
    %v276 = vmax.f32 %v214, 0.0
    %v277 = vmax.f32 %v217, 0.0
    %v278 = vmax.f32 %v222, 0.0
    %v279 = vmax.f32 %v225, 0.0
    %v280 = vmax.f32 %v230, 0.0
    %v281 = vmax.f32 %v233, 0.0
    %v282 = vmax.f32 %v238, 0.0
    %v283 = vmax.f32 %v241, 0.0
    %v284 = vmax.f32 %v246, 0.0
    %v285 = vmax.f32 %v249, 0.0
    %v286 = vmax.f32 %v254, 0.0
    %v287 = vmax.f32 %v257, 0.0
    %v288 = vmax.f32 %v262, 0.0
    %v289 = vmax.f32 %v265, 0.0
    %v290 = vmax.f32 %v270, 0.0
    %v291 = vmax.f32 %v273, 0.0
    %v292 = vpack.c.bf16 %v277, %v276
    %v293 = vpack.c.bf16 %v279, %v278
    %v294 = vpack.c.bf16 %v281, %v280
    %v295 = vpack.c.bf16 %v283, %v282
    %v296 = vpack.c.bf16 %v285, %v284
    %v297 = vpack.c.bf16 %v287, %v286
    %v298 = vpack.c.bf16 %v289, %v288
    %v299 = vpack.c.bf16 %v291, %v290
    %v308 = vunpack.c.l.b16 %v292
    %v309 = vunpack.c.h.b16 %v292
    %v310 = vunpack.c.l.b16 %v293
    %v311 = vunpack.c.h.b16 %v293
    %v312 = vunpack.c.l.b16 %v294
    %v313 = vunpack.c.h.b16 %v294
    %v314 = vunpack.c.l.b16 %v295
    %v315 = vunpack.c.h.b16 %v295
    %v316 = vunpack.c.l.b16 %v296
    %v317 = vunpack.c.h.b16 %v296
    %v318 = vunpack.c.l.b16 %v297
    %v319 = vunpack.c.h.b16 %v297
    %v320 = vunpack.c.l.b16 %v298
    %v321 = vunpack.c.h.b16 %v298
    %v322 = vunpack.c.l.b16 %v299
    %v323 = vunpack.c.h.b16 %v299
    %v324 = vpack.c.b16 %v308, %v308
    %v325 = vpack.c.b16 %v309, %v309
    %v326 = vpack.c.b16 %v310, %v310
    %v327 = vpack.c.b16 %v311, %v311
    %v328 = vpack.c.b16 %v312, %v312
    %v329 = vpack.c.b16 %v313, %v313
    %v330 = vpack.c.b16 %v314, %v314
    %v331 = vpack.c.b16 %v315, %v315
    %v332 = vpack.c.b16 %v316, %v316
    %v333 = vpack.c.b16 %v317, %v317
    %v334 = vpack.c.b16 %v318, %v318
    %v335 = vpack.c.b16 %v319, %v319
    %v336 = vpack.c.b16 %v320, %v320
    %v337 = vpack.c.b16 %v321, %v321
    %v338 = vpack.c.b16 %v322, %v322
    %v339 = vpack.c.b16 %v323, %v323
    %356 = vst [vmem:[#allocation7] sm:$0xf] %v324
    %357 = vst [vmem:[#allocation7 + $0x4] sm:$0xf] %v325
    %358 = vst [vmem:[#allocation7 + $0x8] sm:$0xf] %v326
    %359 = vst [vmem:[#allocation7 + $0xc] sm:$0xf] %v327
    %360 = vst [vmem:[#allocation7 + $0x10] sm:$0xf] %v328
    %361 = vst [vmem:[#allocation7 + $0x14] sm:$0xf] %v329
    %362 = vst [vmem:[#allocation7 + $0x18] sm:$0xf] %v330
    %363 = vst [vmem:[#allocation7 + $0x1c] sm:$0xf] %v331
    %364 = vst [vmem:[#allocation7 + $0x20] sm:$0xf] %v332
    %365 = vst [vmem:[#allocation7 + $0x24] sm:$0xf] %v333
    %366 = vst [vmem:[#allocation7 + $0x28] sm:$0xf] %v334
    %367 = vst [vmem:[#allocation7 + $0x2c] sm:$0xf] %v335
    %368 = vst [vmem:[#allocation7 + $0x30] sm:$0xf] %v336
    %369 = vst [vmem:[#allocation7 + $0x34] sm:$0xf] %v337
    %370 = vst [vmem:[#allocation7 + $0x38] sm:$0xf] %v338
    %371 = vst [vmem:[#allocation7 + $0x3c] sm:$0xf] %v339
    // Predicated region
    $region22: #{tpu_custom_call.1} parent=1 // pred_check
      _
    $region23: #{tpu_custom_call.1} parent=1 // pred_check_branch
      %373 = sbr.rel (0) target = $region25
    $region24: #{tpu_custom_call.1} parent=1 // pred_region
      %s375 = ssub.s32 1024, 1024
      %376 = vsyncadd [#allocation4], %s375
      %s377 = sshll.u32 [#allocation7], 4
      %s378 = int_to_ptr.vmem [resolvable:$true] %s377
      %383 = dma.vmem_to_hbm [thread:$0]  %s378, 1024, %s3, [#allocation4], 64, 64, 4
    $region25: #{tpu_custom_call.1} parent=1 // pred_fallthru
      _
    // Predicated region
    $region26: #{tpu_custom_call.1} parent=1 // pred_check
      _
    $region27: #{tpu_custom_call.1} parent=1 // pred_check_branch
      %385 = sbr.rel (0) target = $region29
    $region28: #{tpu_custom_call.1} parent=1 // pred_region
      %386 = dma.done [#allocation4], 1024
    $region29: #{tpu_custom_call.1} parent=1 // pred_fallthru
      _
    %387 = vsyncpa [#allocation3], 1
    %388 = vsyncpa [#allocation6], 1
    %389 = vsyncpa [#allocation4], 1

</llo_original>
